<compile_context>
chip_gen: v5e
topology: v5e:2x2
jax: 0.10.0
libtpu: 0.0.40
codegen_flags: <defaults>
</compile_context>

<pallas_src>
import functools

import jax
import jax.numpy as jnp
from jax.experimental import pallas as pl
from jax.experimental.pallas import tpu as pltpu


def _split3_f32_to_bf16(x):
    """3-way bf16 split of an f32 array; sum of parts recovers x to ~f32 precision."""
    p0 = x.astype(jnp.bfloat16)
    r1 = x - p0.astype(jnp.float32)
    p1 = r1.astype(jnp.bfloat16)
    r2 = r1 - p1.astype(jnp.float32)
    p2 = r2.astype(jnp.bfloat16)
    return p0, p1, p2


def _margin_loss_kernel(*refs, margin, tile_rows, chunk_rows, batch_rows,
                        width, pack, inner_steps, num_blocks, need_mask,
                        need_block_guard):
    """Accumulates hinge partial sums into a resident (8, width) output block."""
    if pack > 1:
        sel_ref, preds_ref, partial_ref = refs
    else:
        preds_ref, partial_ref = refs

    p = pl.program_id(0)          # TensorCore partition axis ("parallel")
    j = pl.program_id(1)          # reduction axis (row tiles within partition)

    @pl.when(j == 0)
    def _():
        partial_ref[...] = jnp.zeros_like(partial_ref)

    block_idx = p * inner_steps + j
    num_chunks = tile_rows // chunk_rows

    def accumulate():
        if pack > 1:
            sel = sel_ref[...].astype(jnp.bfloat16)   # exact 0/1 entries

        def chunk_body(c, acc):
            start = pl.multiple_of(c * chunk_rows, chunk_rows)
            x = preds_ref[pl.ds(start, chunk_rows), :].astype(jnp.float32)
            if pack > 1:
                # Broadcast each packed row's "correct" score (lane r*C) across
                # its C-lane segment via an exact bf16x3 selection matmul.
                p0, p1, p2 = _split3_f32_to_bf16(x)
                correct = (jnp.dot(p0, sel, preferred_element_type=jnp.float32)
                           + jnp.dot(p1, sel, preferred_element_type=jnp.float32)
                           + jnp.dot(p2, sel, preferred_element_type=jnp.float32))
            else:
                correct = x[:, 0:1]
            hinge = jnp.maximum(margin - correct + x, 0.0)
            if need_mask:
                row_ids = (block_idx * tile_rows + start
                           + jax.lax.broadcasted_iota(jnp.int32, (chunk_rows, 1), 0))
                hinge = jnp.where(row_ids < batch_rows, hinge, 0.0)
            # Fold (chunk_rows, W) -> (8, W) with cheap vreg adds (no XLU reduce).
            folded = hinge.reshape(chunk_rows // 8, 8, width).sum(axis=0)
            return acc + folded

        acc = jax.lax.fori_loop(0, num_chunks, chunk_body,
                                jnp.zeros((8, width), jnp.float32))
        partial_ref[...] += acc

    if need_block_guard:
        # Odd block count split across 2 partitions: skip the duplicated
        # (clamped) trailing block so nothing is double counted.
        pl.when(block_idx < num_blocks)(accumulate)
    else:
        accumulate()


def margin_loss(preds, margin, *, tile_rows=None):
    """Computes relu(margin - preds[..., 0:1] + preds).mean() on TPU."""
    B, C = preds.shape
    orig_elems = B * C
    itemsize = jnp.dtype(preds.dtype).itemsize

    # --- Lane packing for small class counts --------------------------------
    pack = 1
    if C < 128:
        max_pack = max(1, 128 // C)
        for cand in range(max_pack, 1, -1):
            if B % cand == 0:
                pack = cand
                break
    if pack > 1:
        preds = preds.reshape(B // pack, pack * C)   # row-major merge: free
    rows, width = preds.shape

    # --- Tile sizing from padded VMEM footprint ------------------------------
    packing = 8 * max(1, 4 // itemsize)              # sublane packing for dtype
    rows_aligned = -(-rows // packing) * packing
    padded_width = -(-width // 128) * 128
    if tile_rows is None:
        budget = 8 * 1024 * 1024                     # bytes per pipeline buffer
        tile_rows = budget // (padded_width * itemsize)
    tile_rows = max(packing, (tile_rows // packing) * packing)
    tile_rows = min(tile_rows, rows_aligned)
    # Chunked fold keeps f32 temporaries small regardless of tile size.
    chunk_rows = max(packing, (min(tile_rows, 512) // packing) * packing)
    tile_rows = max(chunk_rows, (tile_rows // chunk_rows) * chunk_rows)

    num_blocks = pl.cdiv(rows, tile_rows)
    num_parts = 2 if num_blocks >= 2 else 1          # both v7x TCs stream
    inner_steps = pl.cdiv(num_blocks, num_parts)
    need_block_guard = num_parts * inner_steps > num_blocks
    need_mask = (rows % tile_rows) != 0

    kernel = functools.partial(
        _margin_loss_kernel,
        margin=float(margin), tile_rows=tile_rows, chunk_rows=chunk_rows,
        batch_rows=rows, width=width, pack=pack, inner_steps=inner_steps,
        num_blocks=num_blocks, need_mask=need_mask,
        need_block_guard=need_block_guard)

    if need_block_guard:
        preds_index_map = lambda p, j: (jnp.minimum(p * inner_steps + j,
                                                    num_blocks - 1), 0)
    else:
        preds_index_map = lambda p, j: (p * inner_steps + j, 0)

    in_specs = [pl.BlockSpec((tile_rows, width), preds_index_map)]
    operands = [preds]
    if pack > 1:
        cols = jnp.arange(width, dtype=jnp.int32)
        sel = (cols[:, None] == (cols[None, :] // C) * C).astype(jnp.float32)
        in_specs = [pl.BlockSpec((width, width), lambda p, j: (0, 0))] + in_specs
        operands = [sel] + operands

    flops = 4 * orig_elems + (6 * rows * width * width if pack > 1 else 0)
    bytes_accessed = (orig_elems * itemsize + num_parts * 8 * width * 4
                      + (width * width * 4 if pack > 1 else 0))

    partials = pl.pallas_call(
        kernel,
        out_shape=jax.ShapeDtypeStruct((num_parts * 8, width), jnp.float32),
        grid_spec=pltpu.PrefetchScalarGridSpec(
            num_scalar_prefetch=0,
            grid=(num_parts, inner_steps),
            in_specs=in_specs,
            # One (8, W) partial-sum slab per partition, resident across the
            # reduction axis (accumulate-into-output pattern).
            out_specs=pl.BlockSpec((8, width), lambda p, j: (p, 0)),
        ),
        compiler_params=pltpu.CompilerParams(
            dimension_semantics=("parallel", "arbitrary"),
            vmem_limit_bytes=40 * 1024 * 1024,
        ),
        cost_estimate=pl.CostEstimate(
            flops=flops, transcendentals=0, bytes_accessed=bytes_accessed),
    )(*operands)

    # Single final cross-lane/sublane reduce + mean, done once in JAX.
    return jnp.sum(partials) / jnp.float32(orig_elems)


def margin_loss_ref(preds, margin):
    correct = preds[..., 0:1]
    return jnp.mean(jax.nn.relu(margin - correct + preds))


if __name__ == "__main__":
    MARGIN = 0.2  # the only parameter of MarginLoss
    key = jax.random.PRNGKey(0)
    k1, k2, k3 = jax.random.split(key, 3)

    # Case 1: lane-aligned class count, single block, no packing.
    preds1 = jax.random.normal(k1, (16, 128), dtype=jnp.float32)
    out1 = jax.block_until_ready(margin_loss(preds1, MARGIN))
    ref1 = margin_loss_ref(preds1, MARGIN)
    assert jnp.allclose(out1, ref1, atol=1e-5, rtol=1e-5), (out1, ref1)

    # Case 2: small class count -> lane-packing path (pack=12, width=120).
    preds2 = jax.random.normal(k2, (96, 10), dtype=jnp.float32)
    out2 = jax.block_until_ready(margin_loss(preds2, MARGIN))
    ref2 = margin_loss_ref(preds2, MARGIN)
    assert jnp.allclose(out2, ref2, atol=1e-5, rtol=1e-5), (out2, ref2)

    # Case 3: odd block count + partial last block -> 2-way partition split,
    # clamped index_map, block guard, and row mask all exercised.
    preds3 = jax.random.normal(k3, (88, 32), dtype=jnp.float32)
    out3 = jax.block_until_ready(margin_loss(preds3, MARGIN, tile_rows=8))
    ref3 = margin_loss_ref(preds3, MARGIN)
    assert jnp.allclose(out3, ref3, atol=1e-5, rtol=1e-5), (out3, ref3)

    print("KERNEL_OK")
</pallas_src>

<mosaic_0001>
module attributes {stable_mosaic.version = 11 : i64} {
  func.func @_margin_loss_kernel(%arg0: i32, %arg1: i32, %arg2: memref<16x128xf32, #tpu.memory_space<vmem>>, %arg3: memref<8x128xf32, #tpu.memory_space<vmem>>) attributes {dimension_semantics = [#tpu.dimension_semantics<parallel>, #tpu.dimension_semantics<arbitrary>], iteration_bounds = array<i64: 1, 1>, scalar_prefetch = 0 : i64, scratch_operands = 0 : i64, tpu.core_type = #tpu.core_type<tc>, window_params = [{transform_indices = @transform_0, window_bounds = array<i64: 16, 128>}, {transform_indices = @transform_1, window_bounds = array<i64: 8, 128>}]} {
    %c0_i32 = arith.constant 0 : i32
    %0 = arith.cmpi eq, %arg1, %c0_i32 : i32
    %1 = arith.extui %0 : i1 to i32
    %c0_i32_0 = arith.constant 0 : i32
    %2 = arith.cmpi ne, %1, %c0_i32_0 : i32
    scf.if %2 {
      %cst_9 = arith.constant 0.000000e+00 : f32
      %21 = vector.broadcast %cst_9 : f32 to vector<8x128xf32>
      %c0_10 = arith.constant 0 : index
      %c0_11 = arith.constant 0 : index
      %22 = vector.load %arg3[%c0_10, %c0_11] : memref<8x128xf32, #tpu.memory_space<vmem>>, vector<8x128xf32>
      tpu.vector_store %arg3[%c0_10, %c0_11], %21 {strides = array<i32>} : memref<8x128xf32, #tpu.memory_space<vmem>>, vector<8x128xf32>,
    } else {
    }
    %cst = arith.constant 0.000000e+00 : f32
    %3 = vector.broadcast %cst : f32 to vector<8x128xf32>
    %c0_i32_1 = arith.constant 0 : i32
    %c16_i32 = arith.constant 16 : i32
    %4 = arith.muli %c0_i32_1, %c16_i32 : i32
    %5 = tpu.assume_multiple %4, 16 : i32
    %6 = arith.index_cast %5 : i32 to index
    %c0 = arith.constant 0 : index
    %7 = vector.load %arg2[%6, %c0] : memref<16x128xf32, #tpu.memory_space<vmem>>, vector<16x128xf32>
    %8 = vector.extract_strided_slice %7 {offsets = [0, 0], sizes = [16, 1], strides = [1, 1]} : vector<16x128xf32> to vector<16x1xf32>
    %cst_2 = arith.constant 2.000000e-01 : f32
    %9 = vector.broadcast %cst_2 : f32 to vector<16x1xf32>
    %10 = arith.subf %9, %8 : vector<16x1xf32>
    %11 = vector.broadcast %10 : vector<16x1xf32> to vector<16x128xf32>
    %12 = arith.addf %11, %7 : vector<16x128xf32>
    %cst_3 = arith.constant 0.000000e+00 : f32
    %13 = vector.broadcast %cst_3 : f32 to vector<16x128xf32>
    %14 = arith.maximumf %12, %13 : vector<16x128xf32>
    %15 = vector.shape_cast %14 : vector<16x128xf32> to vector<2x8x128xf32>
    %cst_4 = arith.constant dense<0.000000e+00> : vector<8x128xf32>
    %16 = vector.multi_reduction <add>, %15, %cst_4 [0] : vector<2x8x128xf32> to vector<8x128xf32>
    %17 = arith.addf %3, %16 : vector<8x128xf32>
    %c1_i32 = arith.constant 1 : i32
    %c0_5 = arith.constant 0 : index
    %c0_6 = arith.constant 0 : index
    %18 = vector.load %arg3[%c0_5, %c0_6] : memref<8x128xf32, #tpu.memory_space<vmem>>, vector<8x128xf32>
    %19 = arith.addf %18, %17 : vector<8x128xf32>
    %c0_7 = arith.constant 0 : index
    %c0_8 = arith.constant 0 : index
    %20 = vector.load %arg3[%c0_7, %c0_8] : memref<8x128xf32, #tpu.memory_space<vmem>>, vector<8x128xf32>
    tpu.vector_store %arg3[%c0_7, %c0_8], %19 {strides = array<i32>} : memref<8x128xf32, #tpu.memory_space<vmem>>, vector<8x128xf32>,
    return
  }
  func.func @transform_0(%arg0: i32, %arg1: i32) -> (i32, i32) {
    %c1_i32 = arith.constant 1 : i32
    %0 = arith.muli %arg0, %c1_i32 : i32
    %1 = arith.addi %0, %arg1 : i32
    %c0_i32 = arith.constant 0 : i32
    %c0_i32_0 = arith.constant 0 : i32
    return %1, %c0_i32 : i32, i32
  }
  func.func @transform_1(%arg0: i32, %arg1: i32) -> (i32, i32) {
    %c0_i32 = arith.constant 0 : i32
    %c0_i32_0 = arith.constant 0 : i32
    return %arg0, %c0_i32 : i32, i32
  }
}

</mosaic_0001>

<llo_original>
// kernel: tpu_custom_call.1
$region0: #{tpu_custom_call.1}
  #allocation0 [shape = 'u32[]', space=smem, size = 0x4, offset = 0x4, fixed_abs, tag = 'smem constant byte address 0x4 - core index']
  #allocation1 [shape = 'u32[72,128]{1,0:T(1,128)}', space=vmem, size = 0x9000, scoped, tag = 'internal scratch']
  %s0 = inlined_call_operand.hbm [shape: f32[16,128], index: 0, kind: input, shape index: {}]
  %s1 = inlined_call_operand.hbm [shape: f32[8,128], index: 1, kind: output, shape index: {}]
  %s2 = sld [smem:[#allocation0]]
  $region22: #{tpu_custom_call.1} parent=0
    _
  %s4 = ssub.s32 1, %s2
  %s5 = scalar_select 0, %s4, %s2
  $region1: #{tpu_custom_call.1} parent=0
    #allocation2 [shape = 'u8[8192]{0}', space=vmem, size = 0x2000, scoped, tag = 'input window, operand 0, single buffered']
    #allocation3 [shape = 's32[1]{0}', space=sflag, size = 0x4, scoped, tag = 'scoped memory for tpu_custom_call.1']
    #allocation4 [shape = 's32[1]{0}', space=sflag, size = 0x4, scoped, tag = 'scoped memory for tpu_custom_call.1']
    #allocation5 [shape = 'u8[4096]{0}', space=vmem, size = 0x1000, scoped, tag = 'output window, operand 0, single buffered']
    %6 = vsyncpa [#allocation3], 0
    %7 = vsyncpa [#allocation4], 0
    // Predicated region
    $region2: #{tpu_custom_call.1} parent=1 // pred_check
      _
    $region3: #{tpu_custom_call.1} parent=1 // pred_check_branch
      %9 = sbr.rel (0) target = $region5
    $region4: #{tpu_custom_call.1} parent=1 // pred_region
      %s10 = sadd.s32 0, 0
      %s11 = smul.u32 2, %s10
      %13 = vsyncadd [#allocation3], 0
      %s14 = smul.addr %s11, 8
      %s15 = scalar_lea.hbm %s0, %s14
      %s16 = sshll.u32 %s15, 4
      %s17 = int_to_ptr.hbm [resolvable:$true] %s16
      %s18 = sshll.u32 [#allocation2], 4
      %s19 = int_to_ptr.vmem [resolvable:$true] %s18
      %24 = dma.hbm_to_vmem [thread:$0]  %s17, 256, %s19, [#allocation3], 128, 128, 8
    $region5: #{tpu_custom_call.1} parent=1 // pred_fallthru
      _
    // Predicated region
    $region6: #{tpu_custom_call.1} parent=1 // pred_check
      _
    $region7: #{tpu_custom_call.1} parent=1 // pred_check_branch
      %26 = sbr.rel (0) target = $region9
    $region8: #{tpu_custom_call.1} parent=1 // pred_region
      %28 = dma.done [#allocation3], 256
    $region9: #{tpu_custom_call.1} parent=1 // pred_fallthru
      _
    %s29 = sadd.s32 0, 0
    %s30 = smul.u32 2, %s29
    %p31 = scmp.eq.s32.totalorder 0, 0
    // Predicated region
    $region10: #{tpu_custom_call.1} parent=1 // pred_check
      %p32 = pneg %p31
    $region11: #{tpu_custom_call.1} parent=1 // pred_check_branch
      %34 = sbr.rel (%p32) target = $region13
    $region12: #{tpu_custom_call.1} parent=1 // pred_region
      %35 = vst [vmem:[#allocation5] sm:$0xff] 0.0
    $region13: #{tpu_custom_call.1} parent=1 // pred_fallthru
      _
    %v36 = vld [vmem:[#allocation2] sm:$0xff]
    %v37 = vld [vmem:[#allocation2 + $0x8] sm:$0xff]
    %v38 = vsub.f32 0.2, %v36
    %v39 = vsub.f32 0.2, %v37
    %41 = vset.pattern.permute.xlu0 0
    %42 = vperm.xlu0 %41, %v38
    %v43 = vpop.permute.xlu0 %42
    %46 = vset.pattern.permute.xlu0 0
    %47 = vperm.xlu0 %46, %v39
    %v48 = vpop.permute.xlu0 %47
    %v50 = vadd.f32 %v43, %v36
    %v51 = vadd.f32 %v48, %v37
    %v52 = vmax.f32 %v50, 0.0
    %v53 = vmax.f32 %v51, 0.0
    %v54 = vadd.f32 %v52, %v53
    %v55 = vadd.f32 %v54, 0.0
    %v56 = vld [vmem:[#allocation5] sm:$0xff]
    %v57 = vadd.f32 %v56, %v55
    %58 = vst [vmem:[#allocation5] sm:$0xff] %v57
    // Predicated region
    $region14: #{tpu_custom_call.1} parent=1 // pred_check
      _
    $region15: #{tpu_custom_call.1} parent=1 // pred_check_branch
      %60 = sbr.rel (0) target = $region17
    $region16: #{tpu_custom_call.1} parent=1 // pred_region
      %62 = vsyncadd [#allocation4], 0
      %s64 = sshll.u32 [#allocation5], 4
      %s65 = int_to_ptr.vmem [resolvable:$true] %s64
      %s66 = sshll.u32 %s1, 4
      %s67 = int_to_ptr.hbm [resolvable:$true] %s66
      %69 = dma.vmem_to_hbm [thread:$0]  %s65, 128, %s67, [#allocation4]
    $region17: #{tpu_custom_call.1} parent=1 // pred_fallthru
      _
    // Predicated region
    $region18: #{tpu_custom_call.1} parent=1 // pred_check
      _
    $region19: #{tpu_custom_call.1} parent=1 // pred_check_branch
      %71 = sbr.rel (0) target = $region21
    $region20: #{tpu_custom_call.1} parent=1 // pred_region
      %73 = dma.done [#allocation4], 128
    $region21: #{tpu_custom_call.1} parent=1 // pred_fallthru
      _
    %74 = vsyncpa [#allocation3], 1
    %75 = vsyncpa [#allocation4], 1

</llo_original>
